<compile_context>
chip_gen: v6e
topology: v6e:2x2x1
jax: 0.10.0
libtpu: 0.0.40
codegen_flags: <defaults>
</compile_context>

<pallas_src>
import numpy as np
import jax
import jax.numpy as jnp
from jax.experimental import pallas as pl
from jax.experimental.pallas import tpu as pltpu

LANES = 128
TR_MAX = 8192


def _cdiv(a, b):
    return -(-a // b)


def _round_up(a, b):
    return _cdiv(a, b) * b


def _int_pow(x, n):
    """x**n for static integer n via repeated squaring (VPU; one EUP recip if n<0)."""
    if n == 0:
        return jnp.ones_like(x)
    neg = n < 0
    n = abs(n)
    acc = None
    base = x
    while n > 0:
        if n & 1:
            acc = base if acc is None else acc * base
        n >>= 1
        if n:
            base = base * base
    if neg:
        acc = 1.0 / acc
    return acc


def _is_simple(p):
    """True if x**p avoids the generic exp/log fallback."""
    p = float(p)
    if p in (0.0, 1.0, 2.0, 0.5, -0.5):
        return True
    if p.is_integer() and abs(p) <= 16:
        return True
    if (2.0 * p).is_integer() and abs(p) <= 16.5:  # half-integers
        return True
    return False


def _pow_static(x, p, lx=None):
    """x ** p with p a static Python float; x is f32 in vregs.

    lx is an optional precomputed jnp.log(x), shared across the moment loop
    when >= 2 moments hit the generic fallback (halves EUP work).
    """
    p = float(p)
    if p == 0.0:
        return jnp.ones_like(x)
    if p == 1.0:
        return x
    if p == 2.0:
        return x * x                            # VPU
    if p == 0.5:
        return jnp.sqrt(x)                      # single EUP op
    if p == -0.5:
        return jax.lax.rsqrt(x)                 # single EUP op
    if p.is_integer() and abs(p) <= 16:
        return _int_pow(x, int(p))              # repeated squaring (VPU)
    if (2.0 * p).is_integer() and abs(p) <= 16.5:
        # Half-integer powers: x**(n+0.5) = x**n * sqrt(x)  (p > 0)
        #                      x**(n-0.5) = x**n * rsqrt(x) (p < 0)
        if p > 0:
            return _int_pow(x, int(np.floor(p))) * jnp.sqrt(x)
        return _int_pow(x, int(np.ceil(p))) * jax.lax.rsqrt(x)
    # Generic fallback through the EUP.
    if lx is not None:
        return jnp.exp(jnp.float32(p) * lx)
    return jnp.power(x, jnp.float32(p))


def _make_kernel_all_moments(moment_vals, in_dtype, out_dtype):
    """One grid step computes every moment for its row tile."""
    n_fallback = sum(0 if _is_simple(p) else 1 for p in moment_vals)
    share_log = n_fallback >= 2

    def kernel(x_ref, o_ref):
        # x_ref: (TR, 128)   o_ref: (M, TR, 128)
        x_raw = x_ref[...]
        x = x_raw.astype(jnp.float32)
        lx = jnp.log(x) if share_log else None
        for k, p in enumerate(moment_vals):
            if float(p) == 1.0 and in_dtype == out_dtype:
                o_ref[k] = x_raw                 # straight copy, no cast round-trip
            else:
                o_ref[k] = _pow_static(x, p, lx).astype(out_dtype)

    return kernel


def _make_kernel_per_moment(moment_vals, in_dtype, out_dtype):
    """One grid step computes a single moment (moment index = program_id(1))."""
    def kernel(x_ref, o_ref):
        # x_ref: (TR, 128)   o_ref: (1, TR, 128)
        k_id = pl.program_id(1)
        x_raw = x_ref[...]
        x = x_raw.astype(jnp.float32)
        for k, p in enumerate(moment_vals):
            @pl.when(k_id == k)
            def _(p=p):
                if float(p) == 1.0 and in_dtype == out_dtype:
                    o_ref[0] = x_raw
                else:
                    o_ref[0] = _pow_static(x, p).astype(out_dtype)

    return kernel


def moments_op(x: jnp.ndarray, moments) -> jnp.ndarray:
    """Pallas equivalent of MomentsOp.forward: x ** moments[:, None, ...]."""
    # `moments` is a static registered buffer -> specialize powers at trace time.
    moment_vals = tuple(float(m) for m in np.asarray(moments, dtype=np.float64))
    M = len(moment_vals)

    orig_shape = tuple(x.shape)
    in_dtype = x.dtype
    out_dtype = in_dtype if jnp.issubdtype(in_dtype, jnp.floating) else jnp.float32
    total = int(np.prod(orig_shape)) if orig_shape else 1

    if M == 0 or total == 0:
        return jnp.zeros((M,) + orig_shape, out_dtype)

    in_itemsize = jnp.dtype(in_dtype).itemsize
    out_itemsize = jnp.dtype(out_dtype).itemsize
    sub_of = {1: 32, 2: 16, 4: 8}
    SUB = max(sub_of.get(in_itemsize, 8), sub_of.get(out_itemsize, 8))

    # --- Flatten to a lane-dense (rows, 128) slab. ---------------------------
    # Only pad to a multiple of 128 (needed for the reshape).  The row axis is
    # NOT padded to the tile size: the grid uses cdiv and Pallas masks the
    # partial last block, so lane-aligned inputs incur zero extra copies.
    padded_total = _round_up(total, LANES)
    x_flat = jnp.reshape(x, (-1,))
    if padded_total != total:
        # Pad with ones so fractional / negative exponents stay finite.
        x_flat = jnp.concatenate(
            [x_flat, jnp.ones((padded_total - total,), dtype=in_dtype)], axis=0)
    rows = padded_total // LANES
    x2d = jnp.reshape(x_flat, (rows, LANES))

    # --- Generation-aware tile sizing. ---------------------------------------
    try:
        vmem_cap = int(getattr(pltpu.get_tpu_info(), "vmem_capacity_bytes",
                               64 << 20))
    except Exception:
        vmem_cap = 64 << 20                       # conservative (v7x per-TC)
    budget = max(4 << 20, vmem_cap // 8)          # per buffer set (in + out block)

    row_bytes_all = LANES * (in_itemsize + M * out_itemsize)
    tr_cap_all = max(SUB, (budget // row_bytes_all) // SUB * SUB)

    # For large M, put the moment index on an inner "arbitrary" grid axis so
    # the output VMEM block is (1, TR, 128) instead of (M, TR, 128); x's block
    # index is unchanged across that axis so it is still fetched once per tile.
    per_moment_grid = M > 1 and (M > 16 or tr_cap_all < 512)

    row_bytes = (LANES * (in_itemsize + out_itemsize) if per_moment_grid
                 else row_bytes_all)
    rows_cap = _round_up(rows, SUB)
    TR = max(SUB, min(TR_MAX, (budget // row_bytes) // SUB * SUB, rows_cap))
    # Prefer >= 8 tiles in flight for pipelining, without dropping below the
    # ~512-row HBM-roofline knee ...
    if _cdiv(rows, TR) < 8:
        TR = max(SUB, min(TR, max(512, _round_up(_cdiv(rows, 8), SUB))))
    # ... and guarantee >= 2 tiles so both v7x TensorCores get work.
    if _cdiv(rows, TR) < 2 and rows > SUB:
        TR = max(SUB, _round_up(_cdiv(rows, 2), SUB))
    n_row_tiles = _cdiv(rows, TR)

    out_block_rows = 1 if per_moment_grid else M
    in_block_bytes = TR * LANES * in_itemsize
    out_block_bytes = out_block_rows * TR * LANES * out_itemsize
    vmem_limit = 2 * (in_block_bytes + out_block_bytes) + (4 << 20)
    vmem_limit = int(min(max(vmem_limit, 16 << 20), max(32 << 20, vmem_cap // 2)))

    # Advisory cost so XLA schedules/overlaps around this HBM-bound call.
    n_eup = sum(1 for p in moment_vals
                if not (float(p).is_integer() and 0.0 <= float(p) <= 16.0))
    cost = pl.CostEstimate(
        flops=3 * M * total,
        transcendentals=n_eup * total,
        bytes_accessed=total * in_itemsize + M * total * out_itemsize,
    )

    if per_moment_grid:
        kernel = _make_kernel_per_moment(moment_vals, in_dtype, out_dtype)
        grid = (n_row_tiles, M)
        in_specs = [pl.BlockSpec((TR, LANES), lambda r, k: (r, 0))]
        out_specs = pl.BlockSpec((1, TR, LANES), lambda r, k: (k, r, 0))
        dim_sem = ("parallel", "arbitrary")
    else:
        kernel = _make_kernel_all_moments(moment_vals, in_dtype, out_dtype)
        grid = (n_row_tiles,)
        in_specs = [pl.BlockSpec((TR, LANES), lambda r: (r, 0))]
        out_specs = pl.BlockSpec((M, TR, LANES), lambda r: (0, r, 0))
        dim_sem = ("parallel",)

    out3d = pl.pallas_call(
        kernel,
        out_shape=jax.ShapeDtypeStruct((M, rows, LANES), out_dtype),
        grid_spec=pltpu.PrefetchScalarGridSpec(
            num_scalar_prefetch=0,
            grid=grid,
            in_specs=in_specs,
            out_specs=out_specs,
        ),
        compiler_params=pltpu.CompilerParams(
            dimension_semantics=dim_sem,
            vmem_limit_bytes=vmem_limit,
        ),
        cost_estimate=cost,
    )(x2d)

    if padded_total != total:
        out_flat = jnp.reshape(out3d, (M, padded_total))[:, :total]
        return jnp.reshape(out_flat, (M,) + orig_shape)
    return jnp.reshape(out3d, (M,) + orig_shape)


def moments_op_ref(x, moments):
    m = jnp.asarray(moments, dtype=jnp.float32)
    return x ** jnp.reshape(m, (-1,) + (1,) * x.ndim)


if __name__ == "__main__":
    key = jax.random.PRNGKey(0)
    k0, k1, k2, k3 = jax.random.split(key, 4)

    # 1) Default module moments [1/2, 1, 2] on a wavelet-modulus-like map
    #    (non-negative values): batch=2, channels=4, spatial=16x16.
    moments = jnp.array([0.5, 1.0, 2.0], dtype=jnp.float32)
    x = jnp.abs(jax.random.normal(k0, (2, 4, 16, 16), dtype=jnp.float32)) + 1e-3
    out = jax.block_until_ready(moments_op(x, moments))
    ref = moments_op_ref(x, moments)
    assert out.shape == (3, 2, 4, 16, 16), out.shape
    assert jnp.allclose(out, ref, rtol=1e-5, atol=1e-6), float(
        jnp.max(jnp.abs(out - ref)))

    # 2) Ragged (non 128-aligned) shape -> small pad + partial last block.
    x2 = jnp.abs(jax.random.normal(k1, (3, 5, 7), dtype=jnp.float32)) + 1e-3
    out2 = jax.block_until_ready(moments_op(x2, moments))
    ref2 = moments_op_ref(x2, moments)
    assert out2.shape == (3, 3, 5, 7), out2.shape
    assert jnp.allclose(out2, ref2, rtol=1e-5, atol=1e-6), float(
        jnp.max(jnp.abs(out2 - ref2)))

    # 3) Lane-aligned but tile-count not divisible (partial block, zero copies)
    #    with two generic-fallback moments -> shared-log path.
    m3 = jnp.array([0.5, 1.0, 1.3, 2.7], dtype=jnp.float32)
    x3 = jnp.abs(jax.random.normal(k2, (2, 4, 24, 16), dtype=jnp.float32)) + 0.1
    out3 = jax.block_until_ready(moments_op(x3, m3))
    ref3 = moments_op_ref(x3, m3)
    assert out3.shape == (4, 2, 4, 24, 16), out3.shape
    assert jnp.allclose(out3, ref3, rtol=1e-4, atol=1e-5), float(
        jnp.max(jnp.abs(out3 - ref3)))

    # 4) Many moments -> per-moment inner grid axis (output VMEM block
    #    independent of M), incl. half-integer / negative / fallback powers.
    m4 = jnp.array([0.5, 1.0, 1.5, 2.0, 2.5, 3.0, -0.5, -1.0, -1.5, 0.8,
                    1.3, 1.7, 2.2, 3.5, 4.0, 5.0, 0.25, 6.0, -2.0, 7.0],
                   dtype=jnp.float32)
    x4 = jnp.abs(jax.random.normal(k3, (2, 4, 32, 32), dtype=jnp.float32)) + 0.1
    out4 = jax.block_until_ready(moments_op(x4, m4))
    ref4 = moments_op_ref(x4, m4)
    assert out4.shape == (20, 2, 4, 32, 32), out4.shape
    assert jnp.allclose(out4, ref4, rtol=1e-4, atol=1e-5), float(
        jnp.max(jnp.abs(out4 - ref4)))

    print("KERNEL_OK")
</pallas_src>

<mosaic_0001>
module attributes {stable_mosaic.version = 11 : i64} {
  func.func @kernel(%arg0: i32, %arg1: memref<8x128xf32, #tpu.memory_space<vmem>>, %arg2: memref<3x8x128xf32, #tpu.memory_space<vmem>>) attributes {dimension_semantics = [#tpu.dimension_semantics<parallel>], iteration_bounds = array<i64: 2>, scalar_prefetch = 0 : i64, scratch_operands = 0 : i64, tpu.core_type = #tpu.core_type<tc>, window_params = [{transform_indices = @transform_0, window_bounds = array<i64: 8, 128>}, {transform_indices = @transform_1, window_bounds = array<i64: 3, 8, 128>}]} {
    %c0 = arith.constant 0 : index
    %c0_0 = arith.constant 0 : index
    %0 = vector.load %arg1[%c0, %c0_0] : memref<8x128xf32, #tpu.memory_space<vmem>>, vector<8x128xf32>
    %1 = math.sqrt %0 : vector<8x128xf32>
    %c0_1 = arith.constant 0 : index
    %c0_2 = arith.constant 0 : index
    %c0_3 = arith.constant 0 : index
    %2 = vector.load %arg2[%c0_1, %c0_2, %c0_3] : memref<3x8x128xf32, #tpu.memory_space<vmem>>, vector<1x8x128xf32>
    %3 = vector.shape_cast %2 : vector<1x8x128xf32> to vector<8x128xf32>
    %4 = vector.shape_cast %1 : vector<8x128xf32> to vector<1x8x128xf32>
    tpu.vector_store %arg2[%c0_1, %c0_2, %c0_3], %4 {strides = array<i32>} : memref<3x8x128xf32, #tpu.memory_space<vmem>>, vector<1x8x128xf32>,
    %c1 = arith.constant 1 : index
    %c0_4 = arith.constant 0 : index
    %c0_5 = arith.constant 0 : index
    %5 = vector.load %arg2[%c1, %c0_4, %c0_5] : memref<3x8x128xf32, #tpu.memory_space<vmem>>, vector<1x8x128xf32>
    %6 = vector.shape_cast %5 : vector<1x8x128xf32> to vector<8x128xf32>
    %7 = vector.shape_cast %0 : vector<8x128xf32> to vector<1x8x128xf32>
    tpu.vector_store %arg2[%c1, %c0_4, %c0_5], %7 {strides = array<i32>} : memref<3x8x128xf32, #tpu.memory_space<vmem>>, vector<1x8x128xf32>,
    %8 = arith.mulf %0, %0 : vector<8x128xf32>
    %c2 = arith.constant 2 : index
    %c0_6 = arith.constant 0 : index
    %c0_7 = arith.constant 0 : index
    %9 = vector.load %arg2[%c2, %c0_6, %c0_7] : memref<3x8x128xf32, #tpu.memory_space<vmem>>, vector<1x8x128xf32>
    %10 = vector.shape_cast %9 : vector<1x8x128xf32> to vector<8x128xf32>
    %11 = vector.shape_cast %8 : vector<8x128xf32> to vector<1x8x128xf32>
    tpu.vector_store %arg2[%c2, %c0_6, %c0_7], %11 {strides = array<i32>} : memref<3x8x128xf32, #tpu.memory_space<vmem>>, vector<1x8x128xf32>,
    return
  }
  func.func @transform_0(%arg0: i32) -> (i32, i32) {
    %c0_i32 = arith.constant 0 : i32
    %c0_i32_0 = arith.constant 0 : i32
    return %arg0, %c0_i32 : i32, i32
  }
  func.func @transform_1(%arg0: i32) -> (i32, i32, i32) {
    %c0_i32 = arith.constant 0 : i32
    %c0_i32_0 = arith.constant 0 : i32
    %c0_i32_1 = arith.constant 0 : i32
    return %c0_i32, %arg0, %c0_i32_0 : i32, i32, i32
  }
}

</mosaic_0001>

<llo_original>
// kernel: tpu_custom_call.1
$region0: #{tpu_custom_call.1}
  #allocation0 [shape = 'u32[]', space=smem, size = 0x4, offset = 0x4, fixed_abs, tag = 'smem constant byte address 0x4 - core index']
  #allocation1 [shape = 'u32[144,128]{1,0:T(1,128)}', space=vmem, size = 0x12000, scoped, tag = 'internal scratch']
  %s0 = inlined_call_operand.hbm [shape: f32[16,128], index: 0, kind: input, shape index: {}]
  %s1 = inlined_call_operand.hbm [shape: f32[3,16,128], index: 1, kind: output, shape index: {}]
  %s2 = sld [smem:[#allocation0]]
  $region41: #{tpu_custom_call.1} parent=0
    _
  %s4 = ssub.s32 1, %s2
  %s5 = scalar_select 0, %s4, %s2
  $region1: #{tpu_custom_call.1} parent=0
    #allocation2 [shape = 'u8[8192]{0}', space=vmem, size = 0x2000, scoped, tag = 'input window, operand 0']
    #allocation3 [shape = 's32[2]{0}', space=sflag, size = 0x8, scoped, tag = 'scoped memory for tpu_custom_call.1']
    #allocation4 [shape = 's32[2]{0}', space=sflag, size = 0x8, scoped, tag = 'scoped memory for tpu_custom_call.1']
    #allocation5 [shape = 'u8[24576]{0}', space=vmem, size = 0x6000, scoped, tag = 'output window, operand 0']
    %6 = vsyncpa [#allocation3], 0
    %s7 = scalar_lea.sflag [#allocation3], 1
    %8 = vsyncpa %s7, 0
    %9 = vsyncpa [#allocation4], 0
    %s10 = scalar_lea.sflag [#allocation4], 1
    %11 = vsyncpa %s10, 0
    loop: start=0, step=1, limit=4
    $region2: #{tpu_custom_call.1} parent=1 // loop_pre_header
      _
    $region3: #{tpu_custom_call.1} parent=1 // loop_header
      %s13 = sphi 0, %s17
      %p14 = scmp.ge.s32.totalorder %s13, 4
      %s23 = sphi 0, %s25
      %s26 = sphi 0, %s23
      %s27 = sphi 0, %s26
      %s43 = sphi 0, %s27
      %s49 = sphi 0, %s51
      %s52 = sphi 0, %s49
      %s53 = sphi 0, %s52
      %s69 = sphi 0, %s53
    $region4: #{tpu_custom_call.1} parent=1 // loop_header_branch
      %16 = sbr.rel (%p14) target = $region8
    $region5: #{tpu_custom_call.1} parent=1 // loop_body
      %s18 = ssub.s32 %s13, 1
      %s19 = ssub.s32 %s13, 2
      %s20 = sadd.s32 %s13, 1
      %s21 = ssub.s32 %s13, %s20
      %p22 = scmp.eq.s32.totalorder %s21, 0
      %s24 = sadd.s32 %s23, 1
      %s25 = scalar_select %p22, %s23, %s24
      %p28 = pneg %p22
      %p29 = scmp.eq.s32.totalorder %s13, 1
      %p30 = por %p28, %p29
      %p31 = scmp.ne.s32.totalorder %s23, %s26
      %p32 = scmp.eq.s32.totalorder %s13, 0
      %p33 = por %p31, %p32
      %p34 = scmp.ne.s32.totalorder %s23, %s26
      %p35 = scmp.eq.s32.totalorder %s18, 1
      %p36 = por %p34, %p35
      %p37 = scmp.ne.s32.totalorder %s26, %s27
      %p38 = scmp.eq.s32.totalorder %s18, 0
      %p39 = por %p37, %p38
      %p40 = scmp.ne.s32.totalorder %s26, %s27
      %p41 = scmp.eq.s32.totalorder %s19, 1
      %p42 = por %p40, %p41
      %p44 = scmp.ne.s32.totalorder %s27, %s43
      %p45 = scmp.eq.s32.totalorder %s19, 0
      %p46 = por %p44, %p45
      %s47 = ssub.s32 %s13, %s20
      %p48 = scmp.eq.s32.totalorder %s47, 0
      %s50 = sadd.s32 %s49, 1
      %s51 = scalar_select %p48, %s49, %s50
      %p54 = pneg %p48
      %p55 = scmp.eq.s32.totalorder %s13, 1
      %p56 = por %p54, %p55
      %p57 = scmp.ne.s32.totalorder %s49, %s52
      %p58 = scmp.eq.s32.totalorder %s13, 0
      %p59 = por %p57, %p58
      %p60 = scmp.ne.s32.totalorder %s49, %s52
      %p61 = scmp.eq.s32.totalorder %s18, 1
      %p62 = por %p60, %p61
      %p63 = scmp.ne.s32.totalorder %s52, %s53
      %p64 = scmp.eq.s32.totalorder %s18, 0
      %p65 = por %p63, %p64
      %p66 = scmp.ne.s32.totalorder %s52, %s53
      %p67 = scmp.eq.s32.totalorder %s19, 1
      %p68 = por %p66, %p67
      %p70 = scmp.ne.s32.totalorder %s53, %s69
      %p71 = scmp.eq.s32.totalorder %s19, 0
      %p72 = por %p70, %p71
      %p73 = scmp.le.s32.totalorder 1, %s13
      %p74 = scmp.lt.s32.totalorder %s13, 3
      %p75 = pnand %p73, %p74
      %p76 = pneg %p75
      // Predicated region
      $region9: #{tpu_custom_call.1} parent=5 // pred_check
        _
      $region10: #{tpu_custom_call.1} parent=5 // pred_check_branch
        %78 = sbr.rel (%p75) target = $region12
      $region11: #{tpu_custom_call.1} parent=5 // pred_region
        %s79 = ssub.s32 %s13, 1
      $region12: #{tpu_custom_call.1} parent=5 // pred_fallthru
        _
      %p80 = scmp.lt.s32.totalorder %s13, 2
      // Predicated region
      $region13: #{tpu_custom_call.1} parent=5 // pred_check
        %p81 = pneg %p80
      $region14: #{tpu_custom_call.1} parent=5 // pred_check_branch
        %83 = sbr.rel (%p81) target = $region16
      $region15: #{tpu_custom_call.1} parent=5 // pred_region
        // Predicated region
        $region17: #{tpu_custom_call.1} parent=15 // pred_check
          %p84 = pneg %p33
        $region18: #{tpu_custom_call.1} parent=15 // pred_check_branch
          %86 = sbr.rel (%p84) target = $region20
        $region19: #{tpu_custom_call.1} parent=15 // pred_region
          %s87 = sand.u32 %s23, 1
          %s88 = scalar_lea.sflag [#allocation3], %s87
          %s89 = sand.u32 %s23, 1
          %s90 = smul.addr %s89, 8
          %s91 = scalar_lea.vmem [#allocation2], %s90
          %s93 = ssub.s32 128, 128
          %94 = vsyncadd %s88, %s93
          %s95 = smul.addr %s13, 128
          %s96 = scalar_lea.hbm %s0, %s95
          %s98 = sshll.u32 %s91, 4
          %s99 = int_to_ptr.vmem [resolvable:$true] %s98
          %101 = dma.hbm_to_vmem [thread:$0]  %s96, 128, %s99, %s88
        $region20: #{tpu_custom_call.1} parent=15 // pred_fallthru
          _
      $region16: #{tpu_custom_call.1} parent=5 // pred_fallthru
        _
      %p102 = scmp.le.s32.totalorder 1, %s13
      %p103 = scmp.lt.s32.totalorder %s13, 3
      %p104 = pnand %p102, %p103
      %p105 = pneg %p104
      // Predicated region
      $region21: #{tpu_custom_call.1} parent=5 // pred_check
        _
      $region22: #{tpu_custom_call.1} parent=5 // pred_check_branch
        %107 = sbr.rel (%p104) target = $region24
      $region23: #{tpu_custom_call.1} parent=5 // pred_region
        %s108 = ssub.s32 %s13, 1
        %s109 = sand.u32 %s26, 1
        %s110 = scalar_lea.sflag [#allocation3], %s109
        %s111 = sand.u32 %s26, 1
        %s112 = smul.addr %s111, 8
        %s113 = scalar_lea.vmem [#allocation2], %s112
        // Predicated region
        $region25: #{tpu_custom_call.1} parent=23 // pred_check
          %p114 = pneg %p39
        $region26: #{tpu_custom_call.1} parent=23 // pred_check_branch
          %116 = sbr.rel (%p114) target = $region28
        $region27: #{tpu_custom_call.1} parent=23 // pred_region
          %117 = dma.done %s110, 128
        $region28: #{tpu_custom_call.1} parent=23 // pred_fallthru
          _
        %s118 = sand.u32 %s26, 1
        %s119 = scalar_lea.sflag [#allocation3], %s118
        %s120 = sand.u32 %s26, 1
        %s121 = smul.addr %s120, 8
        %s122 = scalar_lea.vmem [#allocation2], %s121
        %p123 = pneg %p39
        %p124 = pneg %p36
        %p125 = pneg %p65
        %p126 = pneg %p62
        %s127 = sand.u32 %s52, 1
        %s128 = scalar_lea.sflag [#allocation4], %s127
        %s129 = sand.u32 %s52, 1
        %s130 = smul.addr %s129, 24
        %s131 = scalar_lea.vmem [#allocation5], %s130
        %v132 = vld [vmem:[%s113] sm:$0xff]
        %v133 = vrsqrt.pop %v132
        %v134 = vmul.f32 %v132, %v133
        %vm135 = vcmp.eq.f32.partialorder %v132, inf
        %v136 = vsel %vm135, %v132, %v134
        %vm137 = vcmp.eq.f32.partialorder %v132, 0.0
        %v138 = vand.u32 %v132, 2147483648
        %v139 = vsel %vm137, %v138, %v136
        %140 = vst [vmem:[%s131] sm:$0xff] %v139
        %s141 = scalar_lea.vmem %s131, 8 [#allocation5]
        %142 = vst [vmem:[%s141] sm:$0xff] %v132
        %v143 = vmul.f32 %v132, %v132
        %s144 = scalar_lea.vmem %s131, 16 [#allocation5]
        %145 = vst [vmem:[%s144] sm:$0xff] %v143
        %s146 = sand.u32 %s52, 1
        %s147 = scalar_lea.sflag [#allocation4], %s146
        %s148 = sand.u32 %s52, 1
        %s149 = smul.addr %s148, 24
        %s150 = scalar_lea.vmem [#allocation5], %s149
        // Predicated region
        $region29: #{tpu_custom_call.1} parent=23 // pred_check
          %p151 = pneg %p62
        $region30: #{tpu_custom_call.1} parent=23 // pred_check_branch
          %153 = sbr.rel (%p151) target = $region32
        $region31: #{tpu_custom_call.1} parent=23 // pred_region
          %s155 = ssub.s32 384, 384
          %156 = vsyncadd %s147, %s155
          %s157 = smul.addr %s18, 128
          %s158 = scalar_lea.hbm %s1, %s157
          %s159 = sshll.u32 %s150, 4
          %s160 = int_to_ptr.vmem [resolvable:$true] %s159
          %165 = dma.vmem_to_hbm [thread:$0]  %s160, 384, %s158, %s147, 128, 256, 8
        $region32: #{tpu_custom_call.1} parent=23 // pred_fallthru
          _
      $region24: #{tpu_custom_call.1} parent=5 // pred_fallthru
        _
      %p166 = scmp.le.s32.totalorder 2, %s13
      // Predicated region
      $region33: #{tpu_custom_call.1} parent=5 // pred_check
        %p167 = pneg %p166
      $region34: #{tpu_custom_call.1} parent=5 // pred_check_branch
        %169 = sbr.rel (%p167) target = $region36
      $region35: #{tpu_custom_call.1} parent=5 // pred_region
        %s170 = ssub.s32 %s13, 2
        // Predicated region
        $region37: #{tpu_custom_call.1} parent=35 // pred_check
          %p171 = pneg %p68
        $region38: #{tpu_custom_call.1} parent=35 // pred_check_branch
          %173 = sbr.rel (%p171) target = $region40
        $region39: #{tpu_custom_call.1} parent=35 // pred_region
          %s174 = sand.u32 %s53, 1
          %s175 = scalar_lea.sflag [#allocation4], %s174
          %s176 = sand.u32 %s53, 1
          %s177 = smul.addr %s176, 24
          %s178 = scalar_lea.vmem [#allocation5], %s177
          %179 = dma.done %s175, 384
        $region40: #{tpu_custom_call.1} parent=35 // pred_fallthru
          _
      $region36: #{tpu_custom_call.1} parent=5 // pred_fallthru
        _
    $region6: #{tpu_custom_call.1} parent=1 // loop_footer
      %s17 = sadd.s32 1, %s13
    $region7: #{tpu_custom_call.1} parent=1 // loop_footer_branch
      %12 = sbr.rel target = $region3
    $region8: #{tpu_custom_call.1} parent=1 // loop_exit
      _
    %180 = vsyncpa [#allocation3], 1
    %s181 = scalar_lea.sflag [#allocation3], 1
    %182 = vsyncpa %s181, 1
    %183 = vsyncpa [#allocation4], 1
    %s184 = scalar_lea.sflag [#allocation4], 1
    %185 = vsyncpa %s184, 1

</llo_original>
